<compile_context>
chip_gen: v6e
topology: v6e:2x2x1
jax: 0.10.0
libtpu: 0.0.40
codegen_flags: <defaults>
</compile_context>

<pallas_src>
import jax
import jax.numpy as jnp
from jax.experimental import pallas as pl
from jax.experimental.pallas import tpu as pltpu


# ---------------------------------------------------------------------------
# Kernels
# ---------------------------------------------------------------------------
def _conv_vpu_kernel(w_ref, b_ref, x_ref, pos_ref, o_ref):
    """Small-C/K path: 1x1 conv + spatial softmax entirely on the VPU.

    w_ref:   SMEM (K, C) f32 scalars
    b_ref:   SMEM (K,)   f32 scalars
    x_ref:   VMEM (TB, C*HW) (flat, lane-aligned channels) or (TB, C, HW)
    pos_ref: VMEM (2, HW)      row 0 = x coords, row 1 = y coords
    o_ref:   VMEM (1, TB, 2K)  lane-dense [x0, y0, x1, y1, ...]
    """
    K, C = w_ref.shape
    HW = pos_ref.shape[1]
    px = pos_ref[pl.ds(0, 1), :]                                   # (1, HW)
    py = pos_ref[pl.ds(1, 1), :]                                   # (1, HW)

    # Hoist the channel loads out of the keypoint loop: each channel is read
    # from VMEM exactly once (C loads total) and the f32 values are reused for
    # all K keypoints (previously the block was re-read K times and the vld
    # slots saturated before the VALU slots).
    if x_ref.ndim == 2:        # flat (TB, C*HW): no sublane padding when C < 8
        xs = [x_ref[:, pl.ds(c * HW, HW)].astype(jnp.float32) for c in range(C)]
    else:                      # (TB, C, HW)
        xs = [x_ref[:, c, :].astype(jnp.float32) for c in range(C)]

    cols = []
    for k in range(K):         # K <= 8 (wrapper gate) so the unroll stays small
        # 1x1 conv as scalar-broadcast multiply-accumulate on the VPU.
        logit = xs[0] * w_ref[k, 0]
        for c in range(1, C):
            logit = logit + xs[c] * w_ref[k, c]
        logit = logit + b_ref[k]
        # stable softmax over the flattened spatial axis (all math f32)
        m = jnp.max(logit, axis=-1, keepdims=True)
        e = jnp.exp(logit - m)
        inv = pl.reciprocal(jnp.sum(e, axis=-1, keepdims=True), approx=False)
        # expected (x, y): VPU multiply + lane reduction (no (HW,2) matmul)
        cols.append(jnp.sum(e * px, axis=-1, keepdims=True) * inv)  # x_k (TB,1)
        cols.append(jnp.sum(e * py, axis=-1, keepdims=True) * inv)  # y_k (TB,1)
    # Single interleaved lane-dense store (no per-k masked placement ops).
    o_ref[0] = jnp.concatenate(cols, axis=-1).astype(o_ref.dtype)   # (TB, 2K)


def _conv_mxu_kernel(w_ref, b_ref, x_ref, pos_ref, o_ref):
    """Large-C/K path: 1x1 conv on the MXU + spatial softmax on VPU/EUP.

    w_ref:   VMEM (K, C) in the activation dtype (bf16 stays bf16)
    b_ref:   VMEM (K, 1) f32
    x_ref:   VMEM (TB, C, HW)
    pos_ref: VMEM (2, HW)
    o_ref:   VMEM (1, TB, K, 2)
    """
    TB, C, HW = x_ref.shape
    K = w_ref.shape[0]
    x = x_ref[...]
    # One batched matmul over the whole batch tile with the (K, C) weight
    # broadcast (held resident) across the TB rows; natural MXU form
    # (contraction dim is the lhs minor / rhs sublane dim), f32 accumulation.
    wb = jnp.broadcast_to(w_ref[...][None], (TB, K, C))
    f = jax.lax.dot_general(
        wb, x, (((2,), (1,)), ((0,), (0,))),
        preferred_element_type=jnp.float32)                        # (TB, K, HW)
    f = f + b_ref[...][None, :, :]
    px = pos_ref[pl.ds(0, 1), :][None]                             # (1, 1, HW)
    py = pos_ref[pl.ds(1, 1), :][None]
    m = jnp.max(f, axis=-1, keepdims=True)
    e = jnp.exp(f - m)
    inv = pl.reciprocal(jnp.sum(e, axis=-1, keepdims=True), approx=False)
    ex = jnp.sum(e * px, axis=-1, keepdims=True) * inv             # (TB, K, 1)
    ey = jnp.sum(e * py, axis=-1, keepdims=True) * inv             # (TB, K, 1)
    # TODO(synk): pack this lane-dense as (TB, 2K) too; the tiny sublane->lane
    # relayout of the (TB, K, 2) result is not worth the lowering risk here.
    o_ref[0] = jnp.concatenate([ex, ey], axis=-1).astype(o_ref.dtype)


def _noconv_kernel(x_ref, pos_ref, o_ref):
    """num_kp=None path: softmax directly over the input channels."""
    f = x_ref[...].astype(jnp.float32)                             # (TB, C, HW)
    px = pos_ref[pl.ds(0, 1), :][None]
    py = pos_ref[pl.ds(1, 1), :][None]
    m = jnp.max(f, axis=-1, keepdims=True)
    e = jnp.exp(f - m)
    inv = pl.reciprocal(jnp.sum(e, axis=-1, keepdims=True), approx=False)
    ex = jnp.sum(e * px, axis=-1, keepdims=True) * inv             # (TB, C, 1)
    ey = jnp.sum(e * py, axis=-1, keepdims=True) * inv
    # TODO(synk): lane-dense (TB, 2C) packing as in the VPU path.
    o_ref[0] = jnp.concatenate([ex, ey], axis=-1).astype(o_ref.dtype)


# ---------------------------------------------------------------------------
# Wrapper helpers
# ---------------------------------------------------------------------------
def _mxu_crossover():
    """VPU<->MXU crossover on the 1x1-conv size C*K (generation aware:
    v5e's 128-wide MXU amortizes smaller matmuls than v6e/v7x's 256-wide)."""
    try:
        kind = jax.devices()[0].device_kind.lower()
    except Exception:
        kind = ""
    if "v5 lite" in kind or "v5e" in kind or "v5lite" in kind:
        return 32
    return 64


def _choose_batch_tile(B, per_batch_in_bytes, per_batch_tmp_bytes):
    """Pick TB (a divisor of B).

    Per-step working set ~= 2*TB*in (double-buffered input block)
                          + TB*tmp (f32 softmax intermediates) + small.
    Target a ~2-4 MiB input block / ~12 MiB working set (hides the HBM->VMEM
    DMA behind compute on all generations and fits v7x's 64 MiB VMEM), and
    only force extra grid steps when the problem is big enough that the
    ~0.35 us per-step overhead is negligible (tiny inputs on single-TC
    v5e/v6e stay a single step)."""
    in_budget = 4 << 20
    work_budget = 12 << 20
    per_work = 2 * per_batch_in_bytes + per_batch_tmp_bytes
    max_tb = B
    if per_batch_in_bytes > 0:
        max_tb = min(max_tb, max(1, in_budget // per_batch_in_bytes))
    if per_work > 0:
        max_tb = min(max_tb, max(1, work_budget // per_work))
    total_in = B * per_batch_in_bytes
    if B >= 2 and total_in >= (2 << 20):        # >=2 steps (megacore / overlap)
        max_tb = min(max_tb, max(1, B // 2))
    if B >= 8 and total_in >= (32 << 20):       # >=8 steps for large inputs
        max_tb = min(max_tb, max(1, B // 8))
    max_tb = max(1, min(max_tb, B))
    tb = 1
    for d in range(1, max_tb + 1):
        if B % d == 0:
            tb = d
    return tb


def make_pos_grid(H, W):
    # Same construction as the PyTorch module (np.meshgrid, 'xy' indexing),
    # stored lane-dense as (2, H*W): row 0 = x coords, row 1 = y coords.
    xs = jnp.linspace(-1.0, 1.0, W)
    ys = jnp.linspace(-1.0, 1.0, H)
    pos_x, pos_y = jnp.meshgrid(xs, ys)                            # each (H, W)
    return jnp.stack([pos_x.reshape(-1), pos_y.reshape(-1)], axis=0)


# ---------------------------------------------------------------------------
# Wrapper
# ---------------------------------------------------------------------------
def spatial_softmax(features, weight=None, bias=None, pos_grid=None):
    """features: (B, C, H, W); weight: (K, C) or None; bias: (K,) or None;
    pos_grid: (2, H*W). Returns (B, K, 2) float32 (PyTorch-compatible)."""
    B, C, H, W = features.shape
    HW = H * W
    if pos_grid is None:
        pos_grid = make_pos_grid(H, W)
    pos = pos_grid.astype(jnp.float32)                 # (2, HW) lane-dense
    itemsize = features.dtype.itemsize

    has_conv = weight is not None
    K = weight.shape[0] if has_conv else C
    if has_conv and bias is None:
        bias = jnp.zeros((K,), jnp.float32)

    # VPU path only for small conv sizes; K<=8 / C<=16 also bounds the Python
    # unroll (keeps live ranges small without a dynamic fori_loop).
    small = has_conv and (C * K <= _mxu_crossover()) and (K <= 8) and (C <= 16)

    # --- VMEM accounting (conservative: (8,128)-padded 3-D input layout, and
    #     the f32 softmax intermediates are included, per review). ---
    c_pad = -(-C // 8) * 8
    k_pad = -(-K // 8) * 8
    hw_pad = -(-HW // 128) * 128
    per_in = c_pad * hw_pad * itemsize                 # per-batch input bytes
    if small:
        per_tmp = (C + 4) * hw_pad * 4                 # hoisted f32 chans + 1 live softmax
    elif has_conv:
        per_tmp = 3 * k_pad * hw_pad * 4               # f, e (+ slack) in f32
    else:
        per_tmp = 3 * c_pad * hw_pad * 4
    TB = _choose_batch_tile(B, per_in, per_tmp)

    # --- input layout: flat (B, C*HW) avoids C<8 sublane padding when the
    #     channel slices stay lane-aligned and the block dims stay
    #     (8,128)-friendly; otherwise keep (B, C, HW). ---
    use_flat = small and (HW % 128 == 0)
    if use_flat and TB != B and TB % 8 != 0:
        cand = [d for d in range(1, TB + 1) if B % d == 0 and d % 8 == 0]
        if cand:
            TB = max(cand)
        else:
            use_flat = False
    G = B // TB

    if use_flat:
        x = features.reshape(B, C * HW)
        x_spec = pl.BlockSpec((TB, C * HW), lambda g: (g, 0))
    else:
        x = features.reshape(B, C, HW)
        x_spec = pl.BlockSpec((TB, C, HW), lambda g: (g, 0, 0))
    pos_spec = pl.BlockSpec((2, HW), lambda g: (0, 0))

    if has_conv:
        if small:
            kernel = _conv_vpu_kernel
            args = (weight.astype(jnp.float32), bias.astype(jnp.float32), x, pos)
            w_spec = pl.BlockSpec(memory_space=pltpu.MemorySpace.SMEM)
            b_spec = pl.BlockSpec(memory_space=pltpu.MemorySpace.SMEM)
        else:
            kernel = _conv_mxu_kernel
            # Weight in the activation dtype (bf16 x bf16 keeps full-rate MXU
            # passes); accumulation stays f32 via preferred_element_type.
            args = (weight.astype(features.dtype),
                    bias.reshape(K, 1).astype(jnp.float32), x, pos)
            w_spec = pl.BlockSpec((K, C), lambda g: (0, 0))
            b_spec = pl.BlockSpec((K, 1), lambda g: (0, 0))
        in_specs = [w_spec, b_spec, x_spec, pos_spec]
    else:
        kernel = _noconv_kernel
        in_specs = [x_spec, pos_spec]
        args = (x, pos)

    if small:
        # Lane-dense per-step output slab [x0,y0,x1,y1,...]: one (TB, 2K)
        # store; reshaped to (B, K, 2) outside the kernel.
        out_shape = jax.ShapeDtypeStruct((G, TB, 2 * K), jnp.float32)
        out_spec = pl.BlockSpec((1, TB, 2 * K), lambda g: (g, 0, 0))
    else:
        out_shape = jax.ShapeDtypeStruct((G, TB, K, 2), jnp.float32)
        out_spec = pl.BlockSpec((1, TB, K, 2), lambda g: (g, 0, 0, 0))

    # Scoped-VMEM limit: double-buffered input + f32 intermediates + slack.
    # Always set it (v5e defaults to only 16 MiB scoped VMEM); cap below
    # v7x's 64 MiB physical VMEM.
    # TODO(synk): if a single batch exceeds this budget, split HW across a
    # second "arbitrary" grid axis with an online-softmax accumulator.
    work = 2 * TB * per_in + TB * per_tmp + 2 * hw_pad * 4 + (1 << 20)
    vmem_limit = int(min(max(32 << 20, (work * 5) // 4), 48 << 20))

    out = pl.pallas_call(
        kernel,
        out_shape=out_shape,
        grid_spec=pltpu.PrefetchScalarGridSpec(
            num_scalar_prefetch=0,
            grid=(G,),
            in_specs=in_specs,
            out_specs=out_spec,
        ),
        compiler_params=pltpu.CompilerParams(
            dimension_semantics=("parallel",),
            vmem_limit_bytes=vmem_limit,
        ),
    )(*args)

    # (G, TB, 2K) [x0,y0,x1,y1,...]  or  (G, TB, K, 2)  ->  (B, K, 2)
    return out.reshape(B, K, 2)


# ---------------------------------------------------------------------------
# Pure-JAX reference + tests
# ---------------------------------------------------------------------------
def spatial_softmax_ref(features, weight, bias, pos_grid):
    B, C, H, W = features.shape
    x = features.astype(jnp.float32)
    if weight is not None:
        K = weight.shape[0]
        f = jnp.einsum("kc,bchw->bkhw", weight.astype(jnp.float32), x,
                       precision="highest")
        f = f + bias.astype(jnp.float32)[None, :, None, None]
    else:
        K = C
        f = x
    f = f.reshape(B * K, H * W)
    att = jax.nn.softmax(f, axis=-1)
    exy = jnp.einsum("ns,cs->nc", att, pos_grid.astype(jnp.float32),
                     precision="highest")              # pos_grid is (2, HW)
    return exy.reshape(B, K, 2)


def _run_case(name, key, B, C, H, W, num_kp, dtype=jnp.float32,
              atol=1e-5, rtol=1e-5):
    k_feat, k_w, k_b = jax.random.split(key, 3)
    features = jax.random.normal(k_feat, (B, C, H, W), dtype=dtype)
    if num_kp is not None:
        bound = 1.0 / (C ** 0.5)      # PyTorch Conv2d fan_in uniform bounds
        weight = jax.random.uniform(k_w, (num_kp, C), minval=-bound,
                                    maxval=bound, dtype=jnp.float32)
        bias = jax.random.uniform(k_b, (num_kp,), minval=-bound,
                                  maxval=bound, dtype=jnp.float32)
        K = num_kp
    else:
        weight, bias, K = None, None, C
    pos_grid = make_pos_grid(H, W)

    out = spatial_softmax(features, weight, bias, pos_grid)
    out = jax.block_until_ready(out)
    ref = spatial_softmax_ref(features, weight, bias, pos_grid)
    assert out.shape == (B, K, 2), (name, out.shape)
    assert jnp.allclose(out, ref, atol=atol, rtol=rtol), (name, out, ref)


if __name__ == "__main__":
    key = jax.random.PRNGKey(0)
    keys = jax.random.split(key, 5)

    # Primary case (matches the module's typical small-num_kp use): VPU path,
    # flat lane-aligned layout.
    _run_case("vpu_flat_f32", keys[0], B=2, C=4, H=16, W=16, num_kp=4)
    # VPU path, non-lane-aligned spatial extent -> 3-D (TB, C, HW) layout.
    _run_case("vpu_3d_f32", keys[1], B=2, C=3, H=12, W=12, num_kp=4)
    # num_kp=None path (softmax directly over the input channels).
    _run_case("noconv_f32", keys[2], B=2, C=8, H=16, W=16, num_kp=None)
    # Large C*K -> MXU 1x1-conv path.
    _run_case("mxu_f32", keys[3], B=2, C=16, H=16, W=16, num_kp=8)
    # bf16 activations through the VPU path (softmax math stays f32).
    _run_case("vpu_flat_bf16", keys[4], B=2, C=4, H=16, W=16, num_kp=4,
              dtype=jnp.bfloat16, atol=1e-4, rtol=1e-4)

    print("KERNEL_OK")
</pallas_src>

<mosaic_0001>
module attributes {stable_mosaic.version = 11 : i64} {
  func.func @_conv_vpu_kernel(%arg0: i32, %arg1: memref<4x4xf32, #tpu.memory_space<smem>>, %arg2: memref<4xf32, #tpu.memory_space<smem>>, %arg3: memref<2x1024xf32, #tpu.memory_space<vmem>>, %arg4: memref<2x256xf32, #tpu.memory_space<vmem>>, %arg5: memref<1x2x8xf32, #tpu.memory_space<vmem>>) attributes {dimension_semantics = [#tpu.dimension_semantics<parallel>], iteration_bounds = array<i64: 1>, scalar_prefetch = 0 : i64, scratch_operands = 0 : i64, tpu.core_type = #tpu.core_type<tc>, window_params = [{transform_indices = @transform_0, window_bounds = array<i64: 4, 4>}, {transform_indices = @transform_1, window_bounds = array<i64: 4>}, {transform_indices = @transform_2, window_bounds = array<i64: 2, 1024>}, {pipeline_mode = #tpu.pipeline_mode<synchronous>, transform_indices = @transform_3, window_bounds = array<i64: 2, 256>}, {transform_indices = @transform_4, window_bounds = array<i64: 1, 2, 8>}]} {
    %c0 = arith.constant 0 : index
    %c0_0 = arith.constant 0 : index
    %0 = vector.load %arg4[%c0, %c0_0] : memref<2x256xf32, #tpu.memory_space<vmem>>, vector<1x256xf32>
    %c1 = arith.constant 1 : index
    %c0_1 = arith.constant 0 : index
    %1 = vector.load %arg4[%c1, %c0_1] : memref<2x256xf32, #tpu.memory_space<vmem>>, vector<1x256xf32>
    %c0_2 = arith.constant 0 : index
    %c0_3 = arith.constant 0 : index
    %2 = vector.load %arg3[%c0_2, %c0_3] : memref<2x1024xf32, #tpu.memory_space<vmem>>, vector<2x256xf32>
    %c0_4 = arith.constant 0 : index
    %c256 = arith.constant 256 : index
    %3 = vector.load %arg3[%c0_4, %c256] : memref<2x1024xf32, #tpu.memory_space<vmem>>, vector<2x256xf32>
    %c0_5 = arith.constant 0 : index
    %c512 = arith.constant 512 : index
    %4 = vector.load %arg3[%c0_5, %c512] : memref<2x1024xf32, #tpu.memory_space<vmem>>, vector<2x256xf32>
    %c0_6 = arith.constant 0 : index
    %c768 = arith.constant 768 : index
    %5 = vector.load %arg3[%c0_6, %c768] : memref<2x1024xf32, #tpu.memory_space<vmem>>, vector<2x256xf32>
    %c0_7 = arith.constant 0 : index
    %c0_8 = arith.constant 0 : index
    %6 = memref.load %arg1[%c0_7, %c0_8] : memref<4x4xf32, #tpu.memory_space<smem>>
    %7 = vector.broadcast %6 : f32 to vector<2x256xf32>
    %8 = arith.mulf %2, %7 : vector<2x256xf32>
    %c0_9 = arith.constant 0 : index
    %c1_10 = arith.constant 1 : index
    %9 = memref.load %arg1[%c0_9, %c1_10] : memref<4x4xf32, #tpu.memory_space<smem>>
    %10 = vector.broadcast %9 : f32 to vector<2x256xf32>
    %11 = arith.mulf %3, %10 : vector<2x256xf32>
    %12 = arith.addf %8, %11 : vector<2x256xf32>
    %c0_11 = arith.constant 0 : index
    %c2 = arith.constant 2 : index
    %13 = memref.load %arg1[%c0_11, %c2] : memref<4x4xf32, #tpu.memory_space<smem>>
    %14 = vector.broadcast %13 : f32 to vector<2x256xf32>
    %15 = arith.mulf %4, %14 : vector<2x256xf32>
    %16 = arith.addf %12, %15 : vector<2x256xf32>
    %c0_12 = arith.constant 0 : index
    %c3 = arith.constant 3 : index
    %17 = memref.load %arg1[%c0_12, %c3] : memref<4x4xf32, #tpu.memory_space<smem>>
    %18 = vector.broadcast %17 : f32 to vector<2x256xf32>
    %19 = arith.mulf %5, %18 : vector<2x256xf32>
    %20 = arith.addf %16, %19 : vector<2x256xf32>
    %c0_13 = arith.constant 0 : index
    %21 = memref.load %arg2[%c0_13] : memref<4xf32, #tpu.memory_space<smem>>
    %22 = vector.broadcast %21 : f32 to vector<2x256xf32>
    %23 = arith.addf %20, %22 : vector<2x256xf32>
    %cst = arith.constant dense<0xFF800000> : vector<2xf32>
    %24 = vector.multi_reduction <maximumf>, %23, %cst [1] : vector<2x256xf32> to vector<2xf32>
    %25 = vector.shape_cast %24 : vector<2xf32> to vector<2x1xf32>
    %26 = vector.broadcast %25 : vector<2x1xf32> to vector<2x256xf32>
    %27 = arith.subf %23, %26 : vector<2x256xf32>
    %28 = math.exp %27 : vector<2x256xf32>
    %cst_14 = arith.constant dense<0.000000e+00> : vector<2xf32>
    %29 = vector.multi_reduction <add>, %28, %cst_14 [1] : vector<2x256xf32> to vector<2xf32>
    %30 = vector.shape_cast %29 : vector<2xf32> to vector<2x1xf32>
    %31 = tpu.reciprocal %30 : vector<2x1xf32> -> vector<2x1xf32>
    %32 = vector.broadcast %0 : vector<1x256xf32> to vector<2x256xf32>
    %33 = arith.mulf %28, %32 : vector<2x256xf32>
    %cst_15 = arith.constant dense<0.000000e+00> : vector<2xf32>
    %34 = vector.multi_reduction <add>, %33, %cst_15 [1] : vector<2x256xf32> to vector<2xf32>
    %35 = vector.shape_cast %34 : vector<2xf32> to vector<2x1xf32>
    %36 = arith.mulf %35, %31 : vector<2x1xf32>
    %37 = vector.broadcast %1 : vector<1x256xf32> to vector<2x256xf32>
    %38 = arith.mulf %28, %37 : vector<2x256xf32>
    %cst_16 = arith.constant dense<0.000000e+00> : vector<2xf32>
    %39 = vector.multi_reduction <add>, %38, %cst_16 [1] : vector<2x256xf32> to vector<2xf32>
    %40 = vector.shape_cast %39 : vector<2xf32> to vector<2x1xf32>
    %41 = arith.mulf %40, %31 : vector<2x1xf32>
    %c1_17 = arith.constant 1 : index
    %c0_18 = arith.constant 0 : index
    %42 = memref.load %arg1[%c1_17, %c0_18] : memref<4x4xf32, #tpu.memory_space<smem>>
    %43 = vector.broadcast %42 : f32 to vector<2x256xf32>
    %44 = arith.mulf %2, %43 : vector<2x256xf32>
    %c1_19 = arith.constant 1 : index
    %c1_20 = arith.constant 1 : index
    %45 = memref.load %arg1[%c1_19, %c1_20] : memref<4x4xf32, #tpu.memory_space<smem>>
    %46 = vector.broadcast %45 : f32 to vector<2x256xf32>
    %47 = arith.mulf %3, %46 : vector<2x256xf32>
    %48 = arith.addf %44, %47 : vector<2x256xf32>
    %c1_21 = arith.constant 1 : index
    %c2_22 = arith.constant 2 : index
    %49 = memref.load %arg1[%c1_21, %c2_22] : memref<4x4xf32, #tpu.memory_space<smem>>
    %50 = vector.broadcast %49 : f32 to vector<2x256xf32>
    %51 = arith.mulf %4, %50 : vector<2x256xf32>
    %52 = arith.addf %48, %51 : vector<2x256xf32>
    %c1_23 = arith.constant 1 : index
    %c3_24 = arith.constant 3 : index
    %53 = memref.load %arg1[%c1_23, %c3_24] : memref<4x4xf32, #tpu.memory_space<smem>>
    %54 = vector.broadcast %53 : f32 to vector<2x256xf32>
    %55 = arith.mulf %5, %54 : vector<2x256xf32>
    %56 = arith.addf %52, %55 : vector<2x256xf32>
    %c1_25 = arith.constant 1 : index
    %57 = memref.load %arg2[%c1_25] : memref<4xf32, #tpu.memory_space<smem>>
    %58 = vector.broadcast %57 : f32 to vector<2x256xf32>
    %59 = arith.addf %56, %58 : vector<2x256xf32>
    %cst_26 = arith.constant dense<0xFF800000> : vector<2xf32>
    %60 = vector.multi_reduction <maximumf>, %59, %cst_26 [1] : vector<2x256xf32> to vector<2xf32>
    %61 = vector.shape_cast %60 : vector<2xf32> to vector<2x1xf32>
    %62 = vector.broadcast %61 : vector<2x1xf32> to vector<2x256xf32>
    %63 = arith.subf %59, %62 : vector<2x256xf32>
    %64 = math.exp %63 : vector<2x256xf32>
    %cst_27 = arith.constant dense<0.000000e+00> : vector<2xf32>
    %65 = vector.multi_reduction <add>, %64, %cst_27 [1] : vector<2x256xf32> to vector<2xf32>
    %66 = vector.shape_cast %65 : vector<2xf32> to vector<2x1xf32>
    %67 = tpu.reciprocal %66 : vector<2x1xf32> -> vector<2x1xf32>
    %68 = vector.broadcast %0 : vector<1x256xf32> to vector<2x256xf32>
    %69 = arith.mulf %64, %68 : vector<2x256xf32>
    %cst_28 = arith.constant dense<0.000000e+00> : vector<2xf32>
    %70 = vector.multi_reduction <add>, %69, %cst_28 [1] : vector<2x256xf32> to vector<2xf32>
    %71 = vector.shape_cast %70 : vector<2xf32> to vector<2x1xf32>
    %72 = arith.mulf %71, %67 : vector<2x1xf32>
    %73 = vector.broadcast %1 : vector<1x256xf32> to vector<2x256xf32>
    %74 = arith.mulf %64, %73 : vector<2x256xf32>
    %cst_29 = arith.constant dense<0.000000e+00> : vector<2xf32>
    %75 = vector.multi_reduction <add>, %74, %cst_29 [1] : vector<2x256xf32> to vector<2xf32>
    %76 = vector.shape_cast %75 : vector<2xf32> to vector<2x1xf32>
    %77 = arith.mulf %76, %67 : vector<2x1xf32>
    %c2_30 = arith.constant 2 : index
    %c0_31 = arith.constant 0 : index
    %78 = memref.load %arg1[%c2_30, %c0_31] : memref<4x4xf32, #tpu.memory_space<smem>>
    %79 = vector.broadcast %78 : f32 to vector<2x256xf32>
    %80 = arith.mulf %2, %79 : vector<2x256xf32>
    %c2_32 = arith.constant 2 : index
    %c1_33 = arith.constant 1 : index
    %81 = memref.load %arg1[%c2_32, %c1_33] : memref<4x4xf32, #tpu.memory_space<smem>>
    %82 = vector.broadcast %81 : f32 to vector<2x256xf32>
    %83 = arith.mulf %3, %82 : vector<2x256xf32>
    %84 = arith.addf %80, %83 : vector<2x256xf32>
    %c2_34 = arith.constant 2 : index
    %c2_35 = arith.constant 2 : index
    %85 = memref.load %arg1[%c2_34, %c2_35] : memref<4x4xf32, #tpu.memory_space<smem>>
    %86 = vector.broadcast %85 : f32 to vector<2x256xf32>
    %87 = arith.mulf %4, %86 : vector<2x256xf32>
    %88 = arith.addf %84, %87 : vector<2x256xf32>
    %c2_36 = arith.constant 2 : index
    %c3_37 = arith.constant 3 : index
    %89 = memref.load %arg1[%c2_36, %c3_37] : memref<4x4xf32, #tpu.memory_space<smem>>
    %90 = vector.broadcast %89 : f32 to vector<2x256xf32>
    %91 = arith.mulf %5, %90 : vector<2x256xf32>
    %92 = arith.addf %88, %91 : vector<2x256xf32>
    %c2_38 = arith.constant 2 : index
    %93 = memref.load %arg2[%c2_38] : memref<4xf32, #tpu.memory_space<smem>>
    %94 = vector.broadcast %93 : f32 to vector<2x256xf32>
    %95 = arith.addf %92, %94 : vector<2x256xf32>
    %cst_39 = arith.constant dense<0xFF800000> : vector<2xf32>
    %96 = vector.multi_reduction <maximumf>, %95, %cst_39 [1] : vector<2x256xf32> to vector<2xf32>
    %97 = vector.shape_cast %96 : vector<2xf32> to vector<2x1xf32>
    %98 = vector.broadcast %97 : vector<2x1xf32> to vector<2x256xf32>
    %99 = arith.subf %95, %98 : vector<2x256xf32>
    %100 = math.exp %99 : vector<2x256xf32>
    %cst_40 = arith.constant dense<0.000000e+00> : vector<2xf32>
    %101 = vector.multi_reduction <add>, %100, %cst_40 [1] : vector<2x256xf32> to vector<2xf32>
    %102 = vector.shape_cast %101 : vector<2xf32> to vector<2x1xf32>
    %103 = tpu.reciprocal %102 : vector<2x1xf32> -> vector<2x1xf32>
    %104 = vector.broadcast %0 : vector<1x256xf32> to vector<2x256xf32>
    %105 = arith.mulf %100, %104 : vector<2x256xf32>
    %cst_41 = arith.constant dense<0.000000e+00> : vector<2xf32>
    %106 = vector.multi_reduction <add>, %105, %cst_41 [1] : vector<2x256xf32> to vector<2xf32>
    %107 = vector.shape_cast %106 : vector<2xf32> to vector<2x1xf32>
    %108 = arith.mulf %107, %103 : vector<2x1xf32>
    %109 = vector.broadcast %1 : vector<1x256xf32> to vector<2x256xf32>
    %110 = arith.mulf %100, %109 : vector<2x256xf32>
    %cst_42 = arith.constant dense<0.000000e+00> : vector<2xf32>
    %111 = vector.multi_reduction <add>, %110, %cst_42 [1] : vector<2x256xf32> to vector<2xf32>
    %112 = vector.shape_cast %111 : vector<2xf32> to vector<2x1xf32>
    %113 = arith.mulf %112, %103 : vector<2x1xf32>
    %c3_43 = arith.constant 3 : index
    %c0_44 = arith.constant 0 : index
    %114 = memref.load %arg1[%c3_43, %c0_44] : memref<4x4xf32, #tpu.memory_space<smem>>
    %115 = vector.broadcast %114 : f32 to vector<2x256xf32>
    %116 = arith.mulf %2, %115 : vector<2x256xf32>
    %c3_45 = arith.constant 3 : index
    %c1_46 = arith.constant 1 : index
    %117 = memref.load %arg1[%c3_45, %c1_46] : memref<4x4xf32, #tpu.memory_space<smem>>
    %118 = vector.broadcast %117 : f32 to vector<2x256xf32>
    %119 = arith.mulf %3, %118 : vector<2x256xf32>
    %120 = arith.addf %116, %119 : vector<2x256xf32>
    %c3_47 = arith.constant 3 : index
    %c2_48 = arith.constant 2 : index
    %121 = memref.load %arg1[%c3_47, %c2_48] : memref<4x4xf32, #tpu.memory_space<smem>>
    %122 = vector.broadcast %121 : f32 to vector<2x256xf32>
    %123 = arith.mulf %4, %122 : vector<2x256xf32>
    %124 = arith.addf %120, %123 : vector<2x256xf32>
    %c3_49 = arith.constant 3 : index
    %c3_50 = arith.constant 3 : index
    %125 = memref.load %arg1[%c3_49, %c3_50] : memref<4x4xf32, #tpu.memory_space<smem>>
    %126 = vector.broadcast %125 : f32 to vector<2x256xf32>
    %127 = arith.mulf %5, %126 : vector<2x256xf32>
    %128 = arith.addf %124, %127 : vector<2x256xf32>
    %c3_51 = arith.constant 3 : index
    %129 = memref.load %arg2[%c3_51] : memref<4xf32, #tpu.memory_space<smem>>
    %130 = vector.broadcast %129 : f32 to vector<2x256xf32>
    %131 = arith.addf %128, %130 : vector<2x256xf32>
    %cst_52 = arith.constant dense<0xFF800000> : vector<2xf32>
    %132 = vector.multi_reduction <maximumf>, %131, %cst_52 [1] : vector<2x256xf32> to vector<2xf32>
    %133 = vector.shape_cast %132 : vector<2xf32> to vector<2x1xf32>
    %134 = vector.broadcast %133 : vector<2x1xf32> to vector<2x256xf32>
    %135 = arith.subf %131, %134 : vector<2x256xf32>
    %136 = math.exp %135 : vector<2x256xf32>
    %cst_53 = arith.constant dense<0.000000e+00> : vector<2xf32>
    %137 = vector.multi_reduction <add>, %136, %cst_53 [1] : vector<2x256xf32> to vector<2xf32>
    %138 = vector.shape_cast %137 : vector<2xf32> to vector<2x1xf32>
    %139 = tpu.reciprocal %138 : vector<2x1xf32> -> vector<2x1xf32>
    %140 = vector.broadcast %0 : vector<1x256xf32> to vector<2x256xf32>
    %141 = arith.mulf %136, %140 : vector<2x256xf32>
    %cst_54 = arith.constant dense<0.000000e+00> : vector<2xf32>
    %142 = vector.multi_reduction <add>, %141, %cst_54 [1] : vector<2x256xf32> to vector<2xf32>
    %143 = vector.shape_cast %142 : vector<2xf32> to vector<2x1xf32>
    %144 = arith.mulf %143, %139 : vector<2x1xf32>
    %145 = vector.broadcast %1 : vector<1x256xf32> to vector<2x256xf32>
    %146 = arith.mulf %136, %145 : vector<2x256xf32>
    %cst_55 = arith.constant dense<0.000000e+00> : vector<2xf32>
    %147 = vector.multi_reduction <add>, %146, %cst_55 [1] : vector<2x256xf32> to vector<2xf32>
    %148 = vector.shape_cast %147 : vector<2xf32> to vector<2x1xf32>
    %149 = arith.mulf %148, %139 : vector<2x1xf32>
    %150 = tpu.concatenate %36, %41, %72, %77, %108, %113, %144, %149 in 1 : vector<2x1xf32>, vector<2x1xf32>, vector<2x1xf32>, vector<2x1xf32>, vector<2x1xf32>, vector<2x1xf32>, vector<2x1xf32>, vector<2x1xf32> -> vector<2x8xf32>
    %c0_56 = arith.constant 0 : index
    %c0_57 = arith.constant 0 : index
    %c0_58 = arith.constant 0 : index
    %151 = vector.load %arg5[%c0_56, %c0_57, %c0_58] : memref<1x2x8xf32, #tpu.memory_space<vmem>>, vector<1x2x8xf32>
    %152 = vector.shape_cast %151 : vector<1x2x8xf32> to vector<2x8xf32>
    %153 = vector.shape_cast %150 : vector<2x8xf32> to vector<1x2x8xf32>
    tpu.vector_store %arg5[%c0_56, %c0_57, %c0_58], %153 {strides = array<i32>} : memref<1x2x8xf32, #tpu.memory_space<vmem>>, vector<1x2x8xf32>,
    return
  }
  func.func @transform_0(%arg0: i32) -> (i32, i32) {
    %c0_i32 = arith.constant 0 : i32
    %c0_i32_0 = arith.constant 0 : i32
    %c0_i32_1 = arith.constant 0 : i32
    return %c0_i32, %c0_i32_0 : i32, i32
  }
  func.func @transform_1(%arg0: i32) -> i32 {
    %c0_i32 = arith.constant 0 : i32
    %c0_i32_0 = arith.constant 0 : i32
    return %c0_i32 : i32
  }
  func.func @transform_2(%arg0: i32) -> (i32, i32) {
    %c0_i32 = arith.constant 0 : i32
    %c0_i32_0 = arith.constant 0 : i32
    return %arg0, %c0_i32 : i32, i32
  }
  func.func @transform_3(%arg0: i32) -> (i32, i32) {
    %c0_i32 = arith.constant 0 : i32
    %c0_i32_0 = arith.constant 0 : i32
    %c0_i32_1 = arith.constant 0 : i32
    return %c0_i32, %c0_i32_0 : i32, i32
  }
  func.func @transform_4(%arg0: i32) -> (i32, i32, i32) {
    %c0_i32 = arith.constant 0 : i32
    %c0_i32_0 = arith.constant 0 : i32
    %c0_i32_1 = arith.constant 0 : i32
    return %arg0, %c0_i32, %c0_i32_0 : i32, i32, i32
  }
}

</mosaic_0001>

<llo_original>
// kernel: tpu_custom_call.1
$region0: #{tpu_custom_call.1}
  #allocation0 [shape = 'u32[]', space=smem, size = 0x4, offset = 0x4, fixed_abs, tag = 'smem constant byte address 0x4 - core index']
  #allocation1 [shape = 'u32[144,128]{1,0:T(1,128)}', space=vmem, size = 0x12000, scoped, tag = 'internal scratch']
  %s0 = inlined_call_operand.hbm [shape: f32[4,4], index: 0, kind: input, shape index: {}]
  %s1 = inlined_call_operand.vmem [shape: f32[4], index: 1, kind: input, shape index: {}]
  %s2 = inlined_call_operand.hbm [shape: f32[2,1024], index: 2, kind: input, shape index: {}]
  %s3 = inlined_call_operand.vmem [shape: f32[2,256], index: 3, kind: input, shape index: {}]
  %s4 = inlined_call_operand.hbm [shape: f32[1,2,8], index: 4, kind: output, shape index: {}]
  %s5 = sld [smem:[#allocation0]]
  $region38: #{tpu_custom_call.1} parent=0
    _
  %s7 = ssub.s32 1, %s5
  %s8 = scalar_select 0, %s7, %s5
  $region1: #{tpu_custom_call.1} parent=0
    #allocation2 [shape = 'u8[2048]{0}', space=smem, size = 0x800, scoped, tag = 'input window, operand 0, single buffered']
    #allocation3 [shape = 's32[1]{0}', space=sflag, size = 0x4, scoped, tag = 'scoped memory for tpu_custom_call.1']
    #allocation4 [shape = 's32[1]{0}', space=sflag, size = 0x4, scoped, tag = 'scoped memory for tpu_custom_call.1']
    #allocation5 [shape = 's32[1]{0}', space=sflag, size = 0x4, scoped, tag = 'scoped memory for tpu_custom_call.1']
    #allocation6 [shape = 's32[1]{0}', space=sflag, size = 0x4, scoped, tag = 'scoped memory for tpu_custom_call.1']
    #allocation7 [shape = 'u8[512]{0}', space=smem, size = 0x200, scoped, tag = 'input window, operand 1, single buffered']
    #allocation8 [shape = 'u8[8192]{0}', space=vmem, size = 0x2000, scoped, tag = 'input window, operand 2, single buffered']
    #allocation9 [shape = 'u8[1024]{0}', space=vmem, size = 0x400, scoped, tag = 'output window, operand 0, single buffered']
    %9 = vsyncpa [#allocation5], 0
    %10 = vsyncpa [#allocation6], 0
    %11 = vsyncpa [#allocation3], 0
    %12 = vsyncpa [#allocation4], 0
    // Predicated region
    $region2: #{tpu_custom_call.1} parent=1 // pred_check
      _
    $region3: #{tpu_custom_call.1} parent=1 // pred_check_branch
      %14 = sbr.rel (0) target = $region5
    $region4: #{tpu_custom_call.1} parent=1 // pred_region
      %s16 = ssub.s32 64, 64
      %17 = vsyncadd [#allocation5], %s16
      %20 = dma.hbm_to_smem %s0, 64, [#allocation2], [#allocation5]
    $region5: #{tpu_custom_call.1} parent=1 // pred_fallthru
      _
    // Predicated region
    $region6: #{tpu_custom_call.1} parent=1 // pred_check
      _
    $region7: #{tpu_custom_call.1} parent=1 // pred_check_branch
      %22 = sbr.rel (0) target = $region9
    $region8: #{tpu_custom_call.1} parent=1 // pred_region
      %s24 = ssub.s32 16, 16
      %25 = vsyncadd [#allocation6], %s24
      %s27 = sshll.u32 %s1, 4
      %s28 = int_to_ptr.vmem [resolvable:$true] %s27
      %30 = dma.vmem_to_smem %s28, 16, [#allocation7], [#allocation6]
    $region9: #{tpu_custom_call.1} parent=1 // pred_fallthru
      _
    // Predicated region
    $region10: #{tpu_custom_call.1} parent=1 // pred_check
      _
    $region11: #{tpu_custom_call.1} parent=1 // pred_check_branch
      %32 = sbr.rel (0) target = $region13
    $region12: #{tpu_custom_call.1} parent=1 // pred_region
      %s34 = ssub.s32 256, 256
      %35 = vsyncadd [#allocation3], %s34
      %s37 = sshll.u32 [#allocation8], 4
      %s38 = int_to_ptr.vmem [resolvable:$true] %s37
      %40 = dma.hbm_to_vmem [thread:$0]  %s2, 256, %s38, [#allocation3]
    $region13: #{tpu_custom_call.1} parent=1 // pred_fallthru
      _
    // Predicated region
    $region14: #{tpu_custom_call.1} parent=1 // pred_check
      _
    $region15: #{tpu_custom_call.1} parent=1 // pred_check_branch
      %42 = sbr.rel (0) target = $region17
    $region16: #{tpu_custom_call.1} parent=1 // pred_region
      _
    $region17: #{tpu_custom_call.1} parent=1 // pred_fallthru
      _
    // Predicated region
    $region18: #{tpu_custom_call.1} parent=1 // pred_check
      _
    $region19: #{tpu_custom_call.1} parent=1 // pred_check_branch
      %44 = sbr.rel (0) target = $region21
    $region20: #{tpu_custom_call.1} parent=1 // pred_region
      %45 = dma.done [#allocation5], 64
    $region21: #{tpu_custom_call.1} parent=1 // pred_fallthru
      _
    // Predicated region
    $region22: #{tpu_custom_call.1} parent=1 // pred_check
      _
    $region23: #{tpu_custom_call.1} parent=1 // pred_check_branch
      %47 = sbr.rel (0) target = $region25
    $region24: #{tpu_custom_call.1} parent=1 // pred_region
      %48 = dma.done [#allocation6], 16
    $region25: #{tpu_custom_call.1} parent=1 // pred_fallthru
      _
    // Predicated region
    $region26: #{tpu_custom_call.1} parent=1 // pred_check
      _
    $region27: #{tpu_custom_call.1} parent=1 // pred_check_branch
      %50 = sbr.rel (0) target = $region29
    $region28: #{tpu_custom_call.1} parent=1 // pred_region
      %51 = dma.done [#allocation3], 256
    $region29: #{tpu_custom_call.1} parent=1 // pred_fallthru
      _
    %52 = sfence
    %v53 = vld [vmem:[%s3] ss:$2 sm:$0x3]
    %s54 = scalar_lea.vmem %s3, 1
    %v55 = vld [vmem:[%s54] ss:$2 sm:$0x3]
    %v56 = vld [vmem:[#allocation8] sm:$0xf]
    %v57 = vld [vmem:[#allocation8 + $0x4] sm:$0xf]
    %v58 = vld [vmem:[#allocation8 + $0x8] sm:$0xf]
    %v59 = vld [vmem:[#allocation8 + $0xc] sm:$0xf]
    %s60 = sld [smem:[#allocation2]]
    %v61 = vstv %s60
    %v62 = vmul.f32 %v56, %v61
    %s63 = sld [smem:[#allocation2 + $0x1]]
    %v64 = vstv %s63
    %v65 = vmul.f32 %v57, %v64
    %v66 = vadd.f32 %v62, %v65
    %s67 = sld [smem:[#allocation2 + $0x2]]
    %v68 = vstv %s67
    %v69 = vmul.f32 %v58, %v68
    %v70 = vadd.f32 %v66, %v69
    %s71 = sld [smem:[#allocation2 + $0x3]]
    %v72 = vstv %s71
    %v73 = vmul.f32 %v59, %v72
    %v74 = vadd.f32 %v70, %v73
    %s75 = sld [smem:[#allocation7]]
    %v76 = vstv %s75
    %v77 = vadd.f32 %v74, %v76
    %v80 = vunpack.c.l.s4 1983009808
    %v81 = vunpack.c.0.s8 %v80
    %v82 = vlaneseq
    %v83 = vshrl.u32 %v82, 7
    %v84 = vsub.s32 %v81, %v83
    %v85 = vrot.slane %v77, %v84
    %v86 = vcombine.high %v85, %v85
    %vm89 = vcmask 1041408
    %v90 = vsel %vm89, %v85, -inf
    %v91 = vsel %vm89, %v86, -inf
    %v92 = vmax.f32 %v90, %v91
    %93 = vmax.xlane.f32.xlu0 %v92
    %v94 = vpop.xlane.xlu0 %93
    %v97 = vunpack.c.l.s4 269488144
    %v98 = vunpack.c.0.s8 %v97
    %v99 = vlaneseq
    %v100 = vshrl.u32 %v99, 7
    %v101 = vsub.s32 %v98, %v100
    %v102 = vrot.slane %v94, %v101
    %v104 = vsub.f32 %v77, %v102
    %v105 = vmul.f32 %v104, 1.442695
    %v106 = vpow.pop %v105
    %v109 = vunpack.c.l.s4 1983009808
    %v110 = vunpack.c.0.s8 %v109
    %v111 = vlaneseq
    %v112 = vshrl.u32 %v111, 7
    %v113 = vsub.s32 %v110, %v112
    %v114 = vrot.slane %v106, %v113
    %v115 = vcombine.high %v114, %v114
    %v118 = vsel %vm89, %v114, 0.0
    %v119 = vsel %vm89, %v115, 0.0
    %v120 = vadd.f32 %v118, %v119
    %121 = vadd.xlane.f32.xlu0 %v120
    %v122 = vpop.xlane.xlu0 %121
    %v123 = vrcp.pop %v122
    %v125 = vlaneseq
    %v126 = vshrl.u32 %v125, 7
    %v127 = vsub.s32 0, %v126
    %v128 = vrot.slane %v53, %v127
    %v129 = vlaneseq
    %v130 = vshrl.u32 %v129, 7
    %v131 = vsub.s32 1, %v130
    %v132 = vrot.slane %v53, %v131
    %v133 = vcombine.low %v128, %v132
    %v135 = vunpack.c.l.s4 1983009808
    %v136 = vunpack.c.0.s8 %v135
    %v137 = vlaneseq
    %v138 = vshrl.u32 %v137, 7
    %v139 = vsub.s32 %v136, %v138
    %v140 = vrot.slane %v133, %v139
    %v142 = vmul.f32 %v106, %v140
    %v145 = vunpack.c.l.s4 1983009808
    %v146 = vunpack.c.0.s8 %v145
    %v147 = vlaneseq
    %v148 = vshrl.u32 %v147, 7
    %v149 = vsub.s32 %v146, %v148
    %v150 = vrot.slane %v142, %v149
    %v151 = vcombine.high %v150, %v150
    %v154 = vsel %vm89, %v150, 0.0
    %v155 = vsel %vm89, %v151, 0.0
    %v156 = vadd.f32 %v154, %v155
    %157 = vadd.xlane.f32.xlu0 %v156
    %v158 = vpop.xlane.xlu0 %157
    %v159 = vmul.f32 %v158, %v123
    %v161 = vlaneseq
    %v162 = vshrl.u32 %v161, 7
    %v163 = vsub.s32 0, %v162
    %v164 = vrot.slane %v55, %v163
    %v165 = vlaneseq
    %v166 = vshrl.u32 %v165, 7
    %v167 = vsub.s32 1, %v166
    %v168 = vrot.slane %v55, %v167
    %v169 = vcombine.low %v164, %v168
    %v171 = vunpack.c.l.s4 1983009808
    %v172 = vunpack.c.0.s8 %v171
    %v173 = vlaneseq
    %v174 = vshrl.u32 %v173, 7
    %v175 = vsub.s32 %v172, %v174
    %v176 = vrot.slane %v169, %v175
    %v178 = vmul.f32 %v106, %v176
    %v181 = vunpack.c.l.s4 1983009808
    %v182 = vunpack.c.0.s8 %v181
    %v183 = vlaneseq
    %v184 = vshrl.u32 %v183, 7
    %v185 = vsub.s32 %v182, %v184
    %v186 = vrot.slane %v178, %v185
    %v187 = vcombine.high %v186, %v186
    %v190 = vsel %vm89, %v186, 0.0
    %v191 = vsel %vm89, %v187, 0.0
    %v192 = vadd.f32 %v190, %v191
    %193 = vadd.xlane.f32.xlu0 %v192
    %v194 = vpop.xlane.xlu0 %193
    %v195 = vmul.f32 %v194, %v123
    %s196 = sld [smem:[#allocation2 + $0x80]]
    %v197 = vstv %s196
    %v198 = vmul.f32 %v56, %v197
    %s199 = sld [smem:[#allocation2 + $0x81]]
    %v200 = vstv %s199
    %v201 = vmul.f32 %v57, %v200
    %v202 = vadd.f32 %v198, %v201
    %s203 = sld [smem:[#allocation2 + $0x82]]
    %v204 = vstv %s203
    %v205 = vmul.f32 %v58, %v204
    %v206 = vadd.f32 %v202, %v205
    %s207 = sld [smem:[#allocation2 + $0x83]]
    %v208 = vstv %s207
    %v209 = vmul.f32 %v59, %v208
    %v210 = vadd.f32 %v206, %v209
    %s211 = sld [smem:[#allocation7 + $0x1]]
    %v212 = vstv %s211
    %v213 = vadd.f32 %v210, %v212
    %v216 = vunpack.c.l.s4 1983009808
    %v217 = vunpack.c.0.s8 %v216
    %v218 = vlaneseq
    %v219 = vshrl.u32 %v218, 7
    %v220 = vsub.s32 %v217, %v219
    %v221 = vrot.slane %v213, %v220
    %v222 = vcombine.high %v221, %v221
    %v225 = vsel %vm89, %v221, -inf
    %v226 = vsel %vm89, %v222, -inf
    %v227 = vmax.f32 %v225, %v226
    %228 = vmax.xlane.f32.xlu0 %v227
    %v229 = vpop.xlane.xlu0 %228
    %v232 = vunpack.c.l.s4 269488144
    %v233 = vunpack.c.0.s8 %v232
    %v234 = vlaneseq
    %v235 = vshrl.u32 %v234, 7
    %v236 = vsub.s32 %v233, %v235
    %v237 = vrot.slane %v229, %v236
    %v239 = vsub.f32 %v213, %v237
    %v240 = vmul.f32 %v239, 1.442695
    %v241 = vpow.pop %v240
    %v244 = vunpack.c.l.s4 1983009808
    %v245 = vunpack.c.0.s8 %v244
    %v246 = vlaneseq
    %v247 = vshrl.u32 %v246, 7
    %v248 = vsub.s32 %v245, %v247
    %v249 = vrot.slane %v241, %v248
    %v250 = vcombine.high %v249, %v249
    %v253 = vsel %vm89, %v249, 0.0
    %v254 = vsel %vm89, %v250, 0.0
    %v255 = vadd.f32 %v253, %v254
    %256 = vadd.xlane.f32.xlu0 %v255
    %v257 = vpop.xlane.xlu0 %256
    %v258 = vrcp.pop %v257
    %v259 = vmul.f32 %v241, %v140
    %v262 = vunpack.c.l.s4 1983009808
    %v263 = vunpack.c.0.s8 %v262
    %v264 = vlaneseq
    %v265 = vshrl.u32 %v264, 7
    %v266 = vsub.s32 %v263, %v265
    %v267 = vrot.slane %v259, %v266
    %v268 = vcombine.high %v267, %v267
    %v271 = vsel %vm89, %v267, 0.0
    %v272 = vsel %vm89, %v268, 0.0
    %v273 = vadd.f32 %v271, %v272
    %274 = vadd.xlane.f32.xlu0 %v273
    %v275 = vpop.xlane.xlu0 %274
    %v276 = vmul.f32 %v275, %v258
    %v277 = vmul.f32 %v241, %v176
    %v280 = vunpack.c.l.s4 1983009808
    %v281 = vunpack.c.0.s8 %v280
    %v282 = vlaneseq
    %v283 = vshrl.u32 %v282, 7
    %v284 = vsub.s32 %v281, %v283
    %v285 = vrot.slane %v277, %v284
    %v286 = vcombine.high %v285, %v285
    %v289 = vsel %vm89, %v285, 0.0
    %v290 = vsel %vm89, %v286, 0.0
    %v291 = vadd.f32 %v289, %v290
    %292 = vadd.xlane.f32.xlu0 %v291
    %v293 = vpop.xlane.xlu0 %292
    %v294 = vmul.f32 %v293, %v258
    %s295 = sld [smem:[#allocation2 + $0x100]]
    %v296 = vstv %s295
    %v297 = vmul.f32 %v56, %v296
    %s298 = sld [smem:[#allocation2 + $0x101]]
    %v299 = vstv %s298
    %v300 = vmul.f32 %v57, %v299
    %v301 = vadd.f32 %v297, %v300
    %s302 = sld [smem:[#allocation2 + $0x102]]
    %v303 = vstv %s302
    %v304 = vmul.f32 %v58, %v303
    %v305 = vadd.f32 %v301, %v304
    %s306 = sld [smem:[#allocation2 + $0x103]]
    %v307 = vstv %s306
    %v308 = vmul.f32 %v59, %v307
    %v309 = vadd.f32 %v305, %v308
    %s310 = sld [smem:[#allocation7 + $0x2]]
    %v311 = vstv %s310
    %v312 = vadd.f32 %v309, %v311
    %v315 = vunpack.c.l.s4 1983009808
    %v316 = vunpack.c.0.s8 %v315
    %v317 = vlaneseq
    %v318 = vshrl.u32 %v317, 7
    %v319 = vsub.s32 %v316, %v318
    %v320 = vrot.slane %v312, %v319
    %v321 = vcombine.high %v320, %v320
    %v324 = vsel %vm89, %v320, -inf
    %v325 = vsel %vm89, %v321, -inf
    %v326 = vmax.f32 %v324, %v325
    %327 = vmax.xlane.f32.xlu0 %v326
    %v328 = vpop.xlane.xlu0 %327
    %v331 = vunpack.c.l.s4 269488144
    %v332 = vunpack.c.0.s8 %v331
    %v333 = vlaneseq
    %v334 = vshrl.u32 %v333, 7
    %v335 = vsub.s32 %v332, %v334
    %v336 = vrot.slane %v328, %v335
    %v338 = vsub.f32 %v312, %v336
    %v339 = vmul.f32 %v338, 1.442695
    %v340 = vpow.pop %v339
    %v343 = vunpack.c.l.s4 1983009808
    %v344 = vunpack.c.0.s8 %v343
    %v345 = vlaneseq
    %v346 = vshrl.u32 %v345, 7
    %v347 = vsub.s32 %v344, %v346
    %v348 = vrot.slane %v340, %v347
    %v349 = vcombine.high %v348, %v348
    %v352 = vsel %vm89, %v348, 0.0
    %v353 = vsel %vm89, %v349, 0.0
    %v354 = vadd.f32 %v352, %v353
    %355 = vadd.xlane.f32.xlu0 %v354
    %v356 = vpop.xlane.xlu0 %355
    %v357 = vrcp.pop %v356
    %v358 = vmul.f32 %v340, %v140
    %v361 = vunpack.c.l.s4 1983009808
    %v362 = vunpack.c.0.s8 %v361
    %v363 = vlaneseq
    %v364 = vshrl.u32 %v363, 7
    %v365 = vsub.s32 %v362, %v364
    %v366 = vrot.slane %v358, %v365
    %v367 = vcombine.high %v366, %v366
    %v370 = vsel %vm89, %v366, 0.0
    %v371 = vsel %vm89, %v367, 0.0
    %v372 = vadd.f32 %v370, %v371
    %373 = vadd.xlane.f32.xlu0 %v372
    %v374 = vpop.xlane.xlu0 %373
    %v375 = vmul.f32 %v374, %v357
    %v376 = vmul.f32 %v340, %v176
    %v379 = vunpack.c.l.s4 1983009808
    %v380 = vunpack.c.0.s8 %v379
    %v381 = vlaneseq
    %v382 = vshrl.u32 %v381, 7
    %v383 = vsub.s32 %v380, %v382
    %v384 = vrot.slane %v376, %v383
    %v385 = vcombine.high %v384, %v384
    %v388 = vsel %vm89, %v384, 0.0
    %v389 = vsel %vm89, %v385, 0.0
    %v390 = vadd.f32 %v388, %v389
    %391 = vadd.xlane.f32.xlu0 %v390
    %v392 = vpop.xlane.xlu0 %391
    %v393 = vmul.f32 %v392, %v357
    %s394 = sld [smem:[#allocation2 + $0x180]]
    %v395 = vstv %s394
    %v396 = vmul.f32 %v56, %v395
    %s397 = sld [smem:[#allocation2 + $0x181]]
    %v398 = vstv %s397
    %v399 = vmul.f32 %v57, %v398
    %v400 = vadd.f32 %v396, %v399
    %s401 = sld [smem:[#allocation2 + $0x182]]
    %v402 = vstv %s401
    %v403 = vmul.f32 %v58, %v402
    %v404 = vadd.f32 %v400, %v403
    %s405 = sld [smem:[#allocation2 + $0x183]]
    %v406 = vstv %s405
    %v407 = vmul.f32 %v59, %v406
    %v408 = vadd.f32 %v404, %v407
    %s409 = sld [smem:[#allocation7 + $0x3]]
    %v410 = vstv %s409
    %v411 = vadd.f32 %v408, %v410
    %v414 = vunpack.c.l.s4 1983009808
    %v415 = vunpack.c.0.s8 %v414
    %v416 = vlaneseq
    %v417 = vshrl.u32 %v416, 7
    %v418 = vsub.s32 %v415, %v417
    %v419 = vrot.slane %v411, %v418
    %v420 = vcombine.high %v419, %v419
    %v423 = vsel %vm89, %v419, -inf
    %v424 = vsel %vm89, %v420, -inf
    %v425 = vmax.f32 %v423, %v424
    %426 = vmax.xlane.f32.xlu0 %v425
    %v427 = vpop.xlane.xlu0 %426
    %v430 = vunpack.c.l.s4 269488144
    %v431 = vunpack.c.0.s8 %v430
    %v432 = vlaneseq
    %v433 = vshrl.u32 %v432, 7
    %v434 = vsub.s32 %v431, %v433
    %v435 = vrot.slane %v427, %v434
    %v437 = vsub.f32 %v411, %v435
    %v438 = vmul.f32 %v437, 1.442695
    %v439 = vpow.pop %v438
    %v442 = vunpack.c.l.s4 1983009808
    %v443 = vunpack.c.0.s8 %v442
    %v444 = vlaneseq
    %v445 = vshrl.u32 %v444, 7
    %v446 = vsub.s32 %v443, %v445
    %v447 = vrot.slane %v439, %v446
    %v448 = vcombine.high %v447, %v447
    %v451 = vsel %vm89, %v447, 0.0
    %v452 = vsel %vm89, %v448, 0.0
    %v453 = vadd.f32 %v451, %v452
    %454 = vadd.xlane.f32.xlu0 %v453
    %v455 = vpop.xlane.xlu0 %454
    %v456 = vrcp.pop %v455
    %v457 = vmul.f32 %v439, %v140
    %v460 = vunpack.c.l.s4 1983009808
    %v461 = vunpack.c.0.s8 %v460
    %v462 = vlaneseq
    %v463 = vshrl.u32 %v462, 7
    %v464 = vsub.s32 %v461, %v463
    %v465 = vrot.slane %v457, %v464
    %v466 = vcombine.high %v465, %v465
    %v469 = vsel %vm89, %v465, 0.0
    %v470 = vsel %vm89, %v466, 0.0
    %v471 = vadd.f32 %v469, %v470
    %472 = vadd.xlane.f32.xlu0 %v471
    %v473 = vpop.xlane.xlu0 %472
    %v474 = vmul.f32 %v473, %v456
    %v475 = vmul.f32 %v439, %v176
    %v478 = vunpack.c.l.s4 1983009808
    %v479 = vunpack.c.0.s8 %v478
    %v480 = vlaneseq
    %v481 = vshrl.u32 %v480, 7
    %v482 = vsub.s32 %v479, %v481
    %v483 = vrot.slane %v475, %v482
    %v484 = vcombine.high %v483, %v483
    %v487 = vsel %vm89, %v483, 0.0
    %v488 = vsel %vm89, %v484, 0.0
    %v489 = vadd.f32 %v487, %v488
    %490 = vadd.xlane.f32.xlu0 %v489
    %v491 = vpop.xlane.xlu0 %490
    %v492 = vmul.f32 %v491, %v456
    %vm493 = vcmask 7168
    %v494 = vsel %vm493, %v159, %v195
    %vm495 = vcmask 15360
    %v496 = vsel %vm495, %v494, %v276
    %vm497 = vcmask 23552
    %v498 = vsel %vm497, %v496, %v294
    %vm499 = vcmask 31744
    %v500 = vsel %vm499, %v498, %v375
    %vm501 = vcmask 39936
    %v502 = vsel %vm501, %v500, %v393
    %vm503 = vcmask 48128
    %v504 = vsel %vm503, %v502, %v474
    %vm505 = vcmask 56320
    %v506 = vsel %vm505, %v504, %v492
    %vm507 = vcmask 58368
    %508 = vst.msk [vmem:[#allocation9] sm:$0x3] %vm507, %v506
    // Predicated region
    $region30: #{tpu_custom_call.1} parent=1 // pred_check
      _
    $region31: #{tpu_custom_call.1} parent=1 // pred_check_branch
      %510 = sbr.rel (0) target = $region33
    $region32: #{tpu_custom_call.1} parent=1 // pred_region
      %s512 = ssub.s32 32, 32
      %513 = vsyncadd [#allocation4], %s512
      %s515 = sshll.u32 [#allocation9], 4
      %s516 = int_to_ptr.vmem [resolvable:$true] %s515
      %518 = dma.vmem_to_hbm [thread:$0]  %s516, 32, %s4, [#allocation4]
    $region33: #{tpu_custom_call.1} parent=1 // pred_fallthru
      _
    // Predicated region
    $region34: #{tpu_custom_call.1} parent=1 // pred_check
      _
    $region35: #{tpu_custom_call.1} parent=1 // pred_check_branch
      %520 = sbr.rel (0) target = $region37
    $region36: #{tpu_custom_call.1} parent=1 // pred_region
      %521 = dma.done [#allocation4], 32
    $region37: #{tpu_custom_call.1} parent=1 // pred_fallthru
      _
    %522 = vsyncpa [#allocation3], 1
    %523 = vsyncpa [#allocation4], 1
    %524 = vsyncpa [#allocation5], 1
    %525 = vsyncpa [#allocation6], 1

</llo_original>
